<compile_context>
chip_gen: v7x
topology: tpu7x:2x2x1
jax: 0.10.0
libtpu: 0.0.40
codegen_flags: <defaults>
</compile_context>

<pallas_src>
import functools

import jax
import jax.numpy as jnp
from jax import lax
from jax.experimental import pallas as pl
from jax.experimental.pallas import tpu as pltpu


# ----------------------------------------------------------------------------
# Glue helpers (plain JAX, NCHW layout).
# ----------------------------------------------------------------------------
def _im2col3x3_nchw(x):
    """(N, C, H, W) -> (N, 9*C, H*W) patches for a 3x3, pad=1, stride=1 conv.

    Channel index of the result is tap-major: (kh*3 + kw)*C + c.
    """
    N, C, H, W = x.shape
    xp = jnp.pad(x, ((0, 0), (0, 0), (1, 1), (1, 1)))
    cols = [xp[:, :, kh:kh + H, kw:kw + W] for kh in range(3) for kw in range(3)]
    col = jnp.concatenate(cols, axis=1)                 # (N, 9C, H, W)
    return col.reshape(N, 9 * C, H * W)


def _fold_conv_bn(w, b, gamma, beta, mean, var, eps):
    """Fold eval-mode BatchNorm into conv weights/bias.

    w: (Co, Ci, 3, 3), b/gamma/beta/mean/var: (Co,).
    Returns w_fold (Co, Ci, 3, 3), b_fold (Co,).
    """
    scale = gamma / jnp.sqrt(var + eps)                 # (Co,)
    w_fold = w * scale[:, None, None, None]
    b_fold = (b - mean) * scale + beta
    return w_fold, b_fold


def _weight_to_kernel_layout(w_fold):
    """(Co, Ci, 3, 3) -> (Co, 9*Ci) matching the tap-major im2col layout."""
    Co, Ci = w_fold.shape[0], w_fold.shape[1]
    return jnp.transpose(w_fold, (0, 2, 3, 1)).reshape(Co, 9 * Ci)


def _pick_hw_tile(hw, max_tile=2048):
    """Largest H*W tile that divides hw, is a multiple of 128, and <= max_tile
    (v7x-safe); falls back to the full extent (always a legal block)."""
    if hw <= max_tile or hw % 128 != 0:
        return hw
    t = max_tile
    while t >= 128:
        if hw % t == 0:
            return t
        t -= 128
    return hw


# ----------------------------------------------------------------------------
# Pallas kernels.
# ----------------------------------------------------------------------------
def _conv_lrelu_kernel(slope, p_ref, w_ref, b_ref, o_ref):
    """o = LeakyReLU(W @ patches + b).

    p_ref: (9*Ci, HWt) bf16, w_ref: (Co, 9*Ci) bf16, b_ref: (Co, 1) f32,
    o_ref: (Co, HWt) f32.  BN (and, for num_layer==1, the residual path) is
    pre-folded into w/b on the host.
    """
    acc = jnp.dot(w_ref[...], p_ref[...], preferred_element_type=jnp.float32)
    out = acc + b_ref[...]
    o_ref[...] = jnp.where(out >= 0.0, out, slope * out)


def _conv_res_lrelu_kernel(slope, p_ref, x_ref, w_ref, b_ref, w1_ref, b1_ref,
                           o_ref):
    """o = LeakyReLU(W @ patches + b + W1 @ x + b1) — used only when
    num_layer > 1 (residual comes from the original input, so it cannot be
    folded into the last layer's 3x3 weights)."""
    acc = jnp.dot(w_ref[...], p_ref[...], preferred_element_type=jnp.float32)
    acc = acc + jnp.dot(w1_ref[...], x_ref[...],
                        preferred_element_type=jnp.float32)
    out = acc + b_ref[...] + b1_ref[...]
    o_ref[...] = jnp.where(out >= 0.0, out, slope * out)


def _conv_pallas(patches, w, b, slope):
    """patches: (N, 9*Ci, HW) bf16; w: (Co, 9*Ci) bf16; b: (Co, 1) f32."""
    N, K9, HW = patches.shape
    Co = w.shape[0]
    hw_tile = _pick_hw_tile(HW)
    return pl.pallas_call(
        functools.partial(_conv_lrelu_kernel, slope),
        out_shape=jax.ShapeDtypeStruct((N, Co, HW), jnp.float32),
        grid=(N, HW // hw_tile),
        in_specs=[
            pl.BlockSpec((None, K9, hw_tile), lambda n, j: (n, 0, j)),
            pl.BlockSpec((Co, K9), lambda n, j: (0, 0)),
            pl.BlockSpec((Co, 1), lambda n, j: (0, 0)),
        ],
        out_specs=pl.BlockSpec((None, Co, hw_tile), lambda n, j: (n, 0, j)),
        compiler_params=pltpu.CompilerParams(
            dimension_semantics=("parallel", "parallel")),
    )(patches, w, b)


def _conv_res_pallas(patches, x_flat, w, b, w1, b1, slope):
    N, K9, HW = patches.shape
    Co = w.shape[0]
    Ci0 = x_flat.shape[1]
    hw_tile = _pick_hw_tile(HW)
    return pl.pallas_call(
        functools.partial(_conv_res_lrelu_kernel, slope),
        out_shape=jax.ShapeDtypeStruct((N, Co, HW), jnp.float32),
        grid=(N, HW // hw_tile),
        in_specs=[
            pl.BlockSpec((None, K9, hw_tile), lambda n, j: (n, 0, j)),
            pl.BlockSpec((None, Ci0, hw_tile), lambda n, j: (n, 0, j)),
            pl.BlockSpec((Co, K9), lambda n, j: (0, 0)),
            pl.BlockSpec((Co, 1), lambda n, j: (0, 0)),
            pl.BlockSpec((Co, Ci0), lambda n, j: (0, 0)),
            pl.BlockSpec((Co, 1), lambda n, j: (0, 0)),
        ],
        out_specs=pl.BlockSpec((None, Co, hw_tile), lambda n, j: (n, 0, j)),
        compiler_params=pltpu.CompilerParams(
            dimension_semantics=("parallel", "parallel")),
    )(patches, x_flat, w, b, w1, b1)


# ----------------------------------------------------------------------------
# resConv forward.
# ----------------------------------------------------------------------------
def resconv_forward(x, params, *, negative_slope=0.2, eps=1e-5):
    """x: (N, Cin, H, W) f32, PyTorch NCHW layout. Returns (N, Cout, H, W) f32."""
    N, Cin, H, W = x.shape
    layers = params["layers"]
    conv11 = params["conv11"]
    L = len(layers)

    y = x
    for i, lp in enumerate(layers):
        Co, Ci = lp["w"].shape[0], lp["w"].shape[1]
        w_f, b_f = _fold_conv_bn(lp["w"], lp["b"], lp["gamma"], lp["beta"],
                                 lp["mean"], lp["var"], eps)
        last = (i == L - 1)

        if last and L == 1:
            # Fold the residual path (1x1 conv, or identity) into the center
            # tap of the already-BN-folded 3x3 weights.
            if conv11 is not None:
                w_f = w_f.at[:, :, 1, 1].add(conv11["w"])
                b_f = b_f + conv11["b"]
            else:
                w_f = w_f.at[:, :, 1, 1].add(jnp.eye(Co, dtype=w_f.dtype))

        w_k = _weight_to_kernel_layout(w_f).astype(jnp.bfloat16)    # (Co, 9*Ci)
        b_k = b_f.reshape(Co, 1).astype(jnp.float32)
        patches = _im2col3x3_nchw(y).astype(jnp.bfloat16)           # (N, 9*Ci, HW)

        if last and L > 1:
            # Residual is taken from the original input x.
            x_flat = x.reshape(N, Cin, H * W).astype(jnp.bfloat16)
            if conv11 is not None:
                w1_k = conv11["w"].astype(jnp.bfloat16)
                b1_k = conv11["b"].reshape(Co, 1).astype(jnp.float32)
            else:
                w1_k = jnp.eye(Co, dtype=jnp.bfloat16)
                b1_k = jnp.zeros((Co, 1), jnp.float32)
            out_flat = _conv_res_pallas(patches, x_flat, w_k, b_k, w1_k, b1_k,
                                        negative_slope)
        else:
            # Intermediate layers carry the in-block LeakyReLU; the fused
            # L == 1 layer carries the final (post-residual) LeakyReLU.
            out_flat = _conv_pallas(patches, w_k, b_k, negative_slope)

        y = out_flat.reshape(N, Co, H, W)

    return y


# ----------------------------------------------------------------------------
# Pure-JAX reference (for a sanity check against the Pallas path).
# ----------------------------------------------------------------------------
def resconv_reference(x, params, *, negative_slope=0.2, eps=1e-5):
    layers = params["layers"]
    L = len(layers)
    y = x
    for i, lp in enumerate(layers):
        y = lax.conv_general_dilated(
            y, lp["w"], window_strides=(1, 1), padding=((1, 1), (1, 1)),
            dimension_numbers=("NCHW", "OIHW", "NCHW"))
        y = y + lp["b"][None, :, None, None]
        scale = lp["gamma"] / jnp.sqrt(lp["var"] + eps)
        y = (y - lp["mean"][None, :, None, None]) * scale[None, :, None, None] \
            + lp["beta"][None, :, None, None]
        if i < L - 1:
            y = jnp.where(y >= 0, y, negative_slope * y)
    if params["conv11"] is not None:
        ident = jnp.einsum("oc,nchw->nohw", params["conv11"]["w"], x) \
                + params["conv11"]["b"][None, :, None, None]
    else:
        ident = x
    out = y + ident
    return jnp.where(out >= 0, out, negative_slope * out)


# ----------------------------------------------------------------------------
# Deterministic parameter init (shapes implied by the PyTorch __init__).
# ----------------------------------------------------------------------------
def init_resconv_params(key, in_channels, conv_channel, num_layer=1):
    keys = jax.random.split(key, num_layer * 6 + 2)

    def nrm(k, shape, scale=0.1):
        return scale * jax.random.normal(k, shape, jnp.float32)

    layers = []
    cin = in_channels
    ki = 0
    for _ in range(num_layer):
        layers.append(dict(
            w=nrm(keys[ki + 0], (conv_channel, cin, 3, 3)),
            b=nrm(keys[ki + 1], (conv_channel,)),
            gamma=1.0 + nrm(keys[ki + 2], (conv_channel,)),
            beta=nrm(keys[ki + 3], (conv_channel,)),
            mean=nrm(keys[ki + 4], (conv_channel,)),
            var=0.5 + jnp.abs(nrm(keys[ki + 5], (conv_channel,))),
        ))
        cin = conv_channel
        ki += 6

    conv11 = None
    if in_channels != conv_channel:
        conv11 = dict(w=nrm(keys[ki], (conv_channel, in_channels)),
                      b=nrm(keys[ki + 1], (conv_channel,)))
    return dict(layers=layers, conv11=conv11)


if __name__ == "__main__":
    B, Cin, H, W = 2, 4, 16, 16
    conv_channel = 32

    key = jax.random.PRNGKey(0)
    kx, kp = jax.random.split(key)
    x = jax.random.normal(kx, (B, Cin, H, W), jnp.float32)
    params = init_resconv_params(kp, Cin, conv_channel, num_layer=1)

    fwd = jax.jit(resconv_forward)
    out = fwd(x, params)
    jax.block_until_ready(out)

    assert out.shape == (B, conv_channel, H, W)
    assert bool(jnp.all(jnp.isfinite(out)))

    ref = resconv_reference(x, params)
    max_err = float(jnp.max(jnp.abs(out - ref)))
    assert max_err < 1e-1, f"max abs error vs reference: {max_err}"

    print("KERNEL_OK")
</pallas_src>

<mosaic_0001>
module attributes {stable_mosaic.version = 11 : i64} {
  func.func @_conv_lrelu_kernel(%arg0: i32, %arg1: i32, %arg2: memref<1x36x256xbf16, #tpu.memory_space<vmem>>, %arg3: memref<32x36xbf16, #tpu.memory_space<vmem>>, %arg4: memref<32x1xf32, #tpu.memory_space<vmem>>, %arg5: memref<1x32x256xf32, #tpu.memory_space<vmem>>) attributes {dimension_semantics = [#tpu.dimension_semantics<parallel>, #tpu.dimension_semantics<parallel>], iteration_bounds = array<i64: 2, 1>, scalar_prefetch = 0 : i64, scratch_operands = 0 : i64, tpu.core_type = #tpu.core_type<tc>, window_params = [{transform_indices = @transform_0, window_bounds = array<i64: 1, 36, 256>}, {pipeline_mode = #tpu.pipeline_mode<synchronous>, transform_indices = @transform_1, window_bounds = array<i64: 32, 36>}, {pipeline_mode = #tpu.pipeline_mode<synchronous>, transform_indices = @transform_2, window_bounds = array<i64: 32, 1>}, {transform_indices = @transform_3, window_bounds = array<i64: 1, 32, 256>}]} {
    %c0 = arith.constant 0 : index
    %c0_0 = arith.constant 0 : index
    %0 = vector.load %arg3[%c0, %c0_0] : memref<32x36xbf16, #tpu.memory_space<vmem>>, vector<32x36xbf16>
    %c0_1 = arith.constant 0 : index
    %c0_2 = arith.constant 0 : index
    %c0_3 = arith.constant 0 : index
    %1 = vector.load %arg2[%c0_1, %c0_2, %c0_3] : memref<1x36x256xbf16, #tpu.memory_space<vmem>>, vector<1x36x256xbf16>
    %2 = vector.shape_cast %1 : vector<1x36x256xbf16> to vector<36x256xbf16>
    %cst = arith.constant dense<0.000000e+00> : vector<32x256xf32>
    %3 = tpu.matmul %0, %2, %cst {dimension_numbers = #tpu.dot_dimension_numbers<[1], [0], [0], [1], [0, 0, 1, 1], [], []>} : vector<32x36xbf16>, vector<36x256xbf16>, vector<32x256xf32> -> vector<32x256xf32>
    %c0_4 = arith.constant 0 : index
    %c0_5 = arith.constant 0 : index
    %4 = vector.load %arg4[%c0_4, %c0_5] : memref<32x1xf32, #tpu.memory_space<vmem>>, vector<32x1xf32>
    %5 = vector.broadcast %4 : vector<32x1xf32> to vector<32x256xf32>
    %6 = arith.addf %3, %5 : vector<32x256xf32>
    %cst_6 = arith.constant 0.000000e+00 : f32
    %7 = vector.broadcast %cst_6 : f32 to vector<32x256xf32>
    %8 = arith.cmpf oge, %6, %7 : vector<32x256xf32>
    %cst_7 = arith.constant 2.000000e-01 : f32
    %9 = vector.broadcast %cst_7 : f32 to vector<32x256xf32>
    %10 = arith.mulf %9, %6 : vector<32x256xf32>
    %11 = arith.select %8, %6, %10 : vector<32x256xi1>, vector<32x256xf32>
    %c0_8 = arith.constant 0 : index
    %c0_9 = arith.constant 0 : index
    %c0_10 = arith.constant 0 : index
    %12 = vector.load %arg5[%c0_8, %c0_9, %c0_10] : memref<1x32x256xf32, #tpu.memory_space<vmem>>, vector<1x32x256xf32>
    %13 = vector.shape_cast %12 : vector<1x32x256xf32> to vector<32x256xf32>
    %14 = vector.shape_cast %11 : vector<32x256xf32> to vector<1x32x256xf32>
    tpu.vector_store %arg5[%c0_8, %c0_9, %c0_10], %14 {strides = array<i32>} : memref<1x32x256xf32, #tpu.memory_space<vmem>>, vector<1x32x256xf32>,
    return
  }
  func.func @transform_0(%arg0: i32, %arg1: i32) -> (i32, i32, i32) {
    %c0_i32 = arith.constant 0 : i32
    %c0_i32_0 = arith.constant 0 : i32
    return %arg0, %c0_i32, %arg1 : i32, i32, i32
  }
  func.func @transform_1(%arg0: i32, %arg1: i32) -> (i32, i32) {
    %c0_i32 = arith.constant 0 : i32
    %c0_i32_0 = arith.constant 0 : i32
    %c0_i32_1 = arith.constant 0 : i32
    return %c0_i32, %c0_i32_0 : i32, i32
  }
  func.func @transform_2(%arg0: i32, %arg1: i32) -> (i32, i32) {
    %c0_i32 = arith.constant 0 : i32
    %c0_i32_0 = arith.constant 0 : i32
    %c0_i32_1 = arith.constant 0 : i32
    return %c0_i32, %c0_i32_0 : i32, i32
  }
  func.func @transform_3(%arg0: i32, %arg1: i32) -> (i32, i32, i32) {
    %c0_i32 = arith.constant 0 : i32
    %c0_i32_0 = arith.constant 0 : i32
    return %arg0, %c0_i32, %arg1 : i32, i32, i32
  }
}

</mosaic_0001>

<llo_original>
// kernel: resconv_forward.1
$region0: #{resconv_forward.1}
  #allocation0 [shape = 'u32[]', space=smem, size = 0x4, offset = 0x4, fixed_abs, tag = 'smem constant byte address 0x4 - core index']
  #allocation1 [shape = 'u32[144,128]{1,0:T(1,128)}', space=vmem, size = 0x12000, scoped, tag = 'internal scratch']
  %s0 = inlined_call_operand.vmem [shape: bf16[2,36,256], index: 0, kind: input, shape index: {}]
  %s1 = inlined_call_operand.vmem [shape: bf16[32,36], index: 1, kind: input, shape index: {}]
  %s2 = inlined_call_operand.vmem [shape: f32[32,1], index: 2, kind: input, shape index: {}]
  %s3 = inlined_call_operand.vmem [shape: f32[2,32,256], index: 3, kind: output, shape index: {}]
  %s4 = sld [smem:[#allocation0]]
  $region45: #{resconv_forward.1} parent=0
    _
  %s6 = ssub.s32 1, %s4
  %s7 = scalar_select 0, %s6, %s4
  loop: start=0, step=1, limit=4
  $region2: #{resconv_forward.1} parent=0 // loop_pre_header
    _
  $region3: #{resconv_forward.1} parent=0 // loop_header
    %s9 = sphi 0, %s13
    %p10 = scmp.ge.s32.totalorder %s9, 4
    %s16 = sphi 0, %s28
    %s17 = sphi 0, %s24
    %s18 = sphi 0, %s16
    %s19 = sphi 0, %s17
    %s20 = sphi 0, %s18
    %s21 = sphi 0, %s19
    %s33 = sphi 0, %s35
    %s36 = sphi 0, %s33
    %s37 = sphi 0, %s36
    %s53 = sphi 0, %s37
    %s57 = sphi 0, %s57
    %s59 = sphi 0, %s57
    %s60 = sphi 0, %s59
    %s74 = sphi 0, %s60
    %s78 = sphi 0, %s78
    %s80 = sphi 0, %s78
    %s81 = sphi 0, %s80
    %s95 = sphi 0, %s81
    %s103 = sphi 0, %s105
    %s106 = sphi 0, %s103
    %s107 = sphi 0, %s106
    %s123 = sphi 0, %s107
  $region4: #{resconv_forward.1} parent=0 // loop_header_branch
    %12 = sbr.rel (%p10) target = $region8
  $region5: #{resconv_forward.1} parent=0 // loop_body
    %s14 = ssub.s32 %s9, 1
    %s15 = ssub.s32 %s9, 2
    %s22 = sadd.s32 1, %s17
    %p23 = scmp.ge.s32.totalorder %s22, 1
    %s24 = scalar_select %p23, 0, %s22
    %s25 = sadd.s32 1, %s16
    %s26 = scalar_select %p23, %s25, %s16
    %p27 = scmp.ge.s32.totalorder %s26, 2
    %s28 = scalar_select %p27, 0, %s26
    %s29 = ssub.s32 %s16, %s28
    %s30 = ssub.s32 %s17, %s24
    %s31 = sor.u32 %s29, %s30
    %p32 = scmp.eq.s32.totalorder %s31, 0
    %s34 = sadd.s32 %s33, 1
    %s35 = scalar_select %p32, %s33, %s34
    %p38 = pneg %p32
    %p39 = scmp.eq.s32.totalorder %s9, 1
    %p40 = por %p38, %p39
    %p41 = scmp.ne.s32.totalorder %s33, %s36
    %p42 = scmp.eq.s32.totalorder %s9, 0
    %p43 = por %p41, %p42
    %p44 = scmp.ne.s32.totalorder %s33, %s36
    %p45 = scmp.eq.s32.totalorder %s14, 1
    %p46 = por %p44, %p45
    %p47 = scmp.ne.s32.totalorder %s36, %s37
    %p48 = scmp.eq.s32.totalorder %s14, 0
    %p49 = por %p47, %p48
    %p50 = scmp.ne.s32.totalorder %s36, %s37
    %p51 = scmp.eq.s32.totalorder %s15, 1
    %p52 = por %p50, %p51
    %p54 = scmp.ne.s32.totalorder %s37, %s53
    %p55 = scmp.eq.s32.totalorder %s15, 0
    %p56 = por %p54, %p55
    %s58 = sadd.s32 %s57, 1
    %p61 = scmp.eq.s32.totalorder %s9, 1
    %p62 = scmp.ne.s32.totalorder %s57, %s59
    %p63 = scmp.eq.s32.totalorder %s9, 0
    %p64 = por %p62, %p63
    %p65 = scmp.ne.s32.totalorder %s57, %s59
    %p66 = scmp.eq.s32.totalorder %s14, 1
    %p67 = por %p65, %p66
    %p68 = scmp.ne.s32.totalorder %s59, %s60
    %p69 = scmp.eq.s32.totalorder %s14, 0
    %p70 = por %p68, %p69
    %p71 = scmp.ne.s32.totalorder %s59, %s60
    %p72 = scmp.eq.s32.totalorder %s15, 1
    %p73 = por %p71, %p72
    %p75 = scmp.ne.s32.totalorder %s60, %s74
    %p76 = scmp.eq.s32.totalorder %s15, 0
    %p77 = por %p75, %p76
    %s79 = sadd.s32 %s78, 1
    %p82 = scmp.eq.s32.totalorder %s9, 1
    %p83 = scmp.ne.s32.totalorder %s78, %s80
    %p84 = scmp.eq.s32.totalorder %s9, 0
    %p85 = por %p83, %p84
    %p86 = scmp.ne.s32.totalorder %s78, %s80
    %p87 = scmp.eq.s32.totalorder %s14, 1
    %p88 = por %p86, %p87
    %p89 = scmp.ne.s32.totalorder %s80, %s81
    %p90 = scmp.eq.s32.totalorder %s14, 0
    %p91 = por %p89, %p90
    %p92 = scmp.ne.s32.totalorder %s80, %s81
    %p93 = scmp.eq.s32.totalorder %s15, 1
    %p94 = por %p92, %p93
    %p96 = scmp.ne.s32.totalorder %s81, %s95
    %p97 = scmp.eq.s32.totalorder %s15, 0
    %p98 = por %p96, %p97
    %s99 = ssub.s32 %s16, %s28
    %s100 = ssub.s32 %s17, %s24
    %s101 = sor.u32 %s99, %s100
    %p102 = scmp.eq.s32.totalorder %s101, 0
    %s104 = sadd.s32 %s103, 1
    %s105 = scalar_select %p102, %s103, %s104
    %p108 = pneg %p102
    %p109 = scmp.eq.s32.totalorder %s9, 1
    %p110 = por %p108, %p109
    %p111 = scmp.ne.s32.totalorder %s103, %s106
    %p112 = scmp.eq.s32.totalorder %s9, 0
    %p113 = por %p111, %p112
    %p114 = scmp.ne.s32.totalorder %s103, %s106
    %p115 = scmp.eq.s32.totalorder %s14, 1
    %p116 = por %p114, %p115
    %p117 = scmp.ne.s32.totalorder %s106, %s107
    %p118 = scmp.eq.s32.totalorder %s14, 0
    %p119 = por %p117, %p118
    %p120 = scmp.ne.s32.totalorder %s106, %s107
    %p121 = scmp.eq.s32.totalorder %s15, 1
    %p122 = por %p120, %p121
    %p124 = scmp.ne.s32.totalorder %s107, %s123
    %p125 = scmp.eq.s32.totalorder %s15, 0
    %p126 = por %p124, %p125
    %p127 = scmp.le.s32.totalorder 1, %s9
    %p128 = scmp.lt.s32.totalorder %s9, 3
    %p129 = pnand %p127, %p128
    %p130 = pneg %p129
    // Predicated region
    $region9: #{resconv_forward.1} parent=5 // pred_check
      _
    $region10: #{resconv_forward.1} parent=5 // pred_check_branch
      %132 = sbr.rel (%p129) target = $region12
    $region11: #{resconv_forward.1} parent=5 // pred_region
      %s133 = ssub.s32 %s9, 1
      // Predicated region
      $region13: #{resconv_forward.1} parent=11 // pred_check
        %p134 = pneg %p70
      $region14: #{resconv_forward.1} parent=11 // pred_check_branch
        %136 = sbr.rel (%p134) target = $region16
      $region15: #{resconv_forward.1} parent=11 // pred_region
        _
      $region16: #{resconv_forward.1} parent=11 // pred_fallthru
        _
      // Predicated region
      $region17: #{resconv_forward.1} parent=11 // pred_check
        %p137 = pneg %p91
      $region18: #{resconv_forward.1} parent=11 // pred_check_branch
        %139 = sbr.rel (%p137) target = $region20
      $region19: #{resconv_forward.1} parent=11 // pred_region
        _
      $region20: #{resconv_forward.1} parent=11 // pred_fallthru
        _
    $region12: #{resconv_forward.1} parent=5 // pred_fallthru
      _
    %p140 = scmp.lt.s32.totalorder %s9, 2
    // Predicated region
    $region21: #{resconv_forward.1} parent=5 // pred_check
      %p141 = pneg %p140
    $region22: #{resconv_forward.1} parent=5 // pred_check_branch
      %143 = sbr.rel (%p141) target = $region24
    $region23: #{resconv_forward.1} parent=5 // pred_region
      // Predicated region
      $region25: #{resconv_forward.1} parent=23 // pred_check
        %p144 = pneg %p43
      $region26: #{resconv_forward.1} parent=23 // pred_check_branch
        %146 = sbr.rel (%p144) target = $region28
      $region27: #{resconv_forward.1} parent=23 // pred_region
        %s147 = smul.u32 2, %s17
        %p148 = scmp.lt.s32.totalorder %s16, 1
        %s149 = scalar_select %p148, %s16, 1
        %p150 = scmp.lt.s32.totalorder %s147, 1
        %s151 = scalar_select %p150, %s147, 1
        %s152 = smul.addr %s149, 10
        %s153 = sadd.s32 %s151, %s152
        %s154 = smul.addr %s153, 4
        %s155 = scalar_lea.vmem %s0, %s154
        %s156 = smul.u32 2, %s17
      $region28: #{resconv_forward.1} parent=23 // pred_fallthru
        _
    $region24: #{resconv_forward.1} parent=5 // pred_fallthru
      _
    %p157 = scmp.le.s32.totalorder 1, %s9
    %p158 = scmp.lt.s32.totalorder %s9, 3
    %p159 = pnand %p157, %p158
    %p160 = pneg %p159
    // Predicated region
    $region29: #{resconv_forward.1} parent=5 // pred_check
      _
    $region30: #{resconv_forward.1} parent=5 // pred_check_branch
      %162 = sbr.rel (%p159) target = $region32
    $region31: #{resconv_forward.1} parent=5 // pred_region
      %s163 = ssub.s32 %s9, 1
      %s164 = smul.u32 2, %s19
      %p165 = scmp.lt.s32.totalorder %s18, 1
      %s166 = scalar_select %p165, %s18, 1
      %p167 = scmp.lt.s32.totalorder %s164, 1
      %s168 = scalar_select %p167, %s164, 1
      %s169 = smul.addr %s166, 10
      %s170 = sadd.s32 %s168, %s169
      %s171 = smul.addr %s170, 4
      %s172 = scalar_lea.vmem %s0, %s171
      %p173 = pneg %p49
      %p174 = pneg %p46
      %p175 = pneg %p70
      %p176 = pneg %p67
      %p177 = pneg %p91
      %p178 = pneg %p88
      %p179 = pneg %p119
      %p180 = pneg %p116
      %s181 = smul.u32 2, %s19
      %p182 = scmp.lt.s32.totalorder %s18, 1
      %s183 = scalar_select %p182, %s18, 1
      %p184 = scmp.lt.s32.totalorder %s181, 1
      %s185 = scalar_select %p184, %s181, 1
      %s186 = smul.addr %s183, 8
      %s187 = sadd.s32 %s185, %s186
      %s188 = smul.addr %s187, 8
      %s189 = scalar_lea.vmem %s3, %s188
      %s190 = smul.u32 2, %s19
      %p191 = scmp.lt.s32.totalorder %s18, 1
      %s192 = scalar_select %p191, %s18, 1
      %p193 = scmp.lt.s32.totalorder %s190, 1
      %s194 = scalar_select %p193, %s190, 1
      %s195 = smul.addr %s192, 10
      %s196 = sadd.s32 %s194, %s195
      %s197 = smul.addr %s196, 4
      %s198 = scalar_lea.vmem %s0, %s197
      %s199 = smul.u32 2, %s19
      %s200 = smul.u32 2, %s19
      %p201 = scmp.lt.s32.totalorder %s18, 1
      %s202 = scalar_select %p201, %s18, 1
      %p203 = scmp.lt.s32.totalorder %s200, 1
      %s204 = scalar_select %p203, %s200, 1
      %s205 = smul.addr %s202, 8
      %s206 = sadd.s32 %s204, %s205
      %s207 = smul.addr %s206, 8
      %s208 = scalar_lea.vmem %s3, %s207
      %s209 = smul.u32 2, %s19
      %v211 = vld [vmem:[%s1] sm:$0xf]
      %v212 = vld [vmem:[%s1 + $0x4] sm:$0xf]
      %v213 = vld [vmem:[%s1 + $0x8] sm:$0xf]
      %v214 = vld [vmem:[%s1 + $0xc] sm:$0xf]
      %v215 = vld [vmem:[%s198] sm:$0xff]
      %v216 = vld [vmem:[%s198 + $0x8] sm:$0xff]
      %v217 = vld [vmem:[%s198 + $0x10] sm:$0xff]
      %v218 = vld [vmem:[%s198 + $0x18] sm:$0xff]
      %v219 = vld [vmem:[%s198 + $0x20] sm:$0x33]
      %v220 = vld [vmem:[%s2] sm:$0xff]
      %v221 = vld [vmem:[%s2 + $0x8] sm:$0xff]
      %v222 = vld [vmem:[%s2 + $0x10] sm:$0xff]
      %v223 = vld [vmem:[%s2 + $0x18] sm:$0xff]
      %225 = vset.pattern.permute.xlu0 0
      %226 = vperm.xlu0 %225, %v220
      %v227 = vpop.permute.xlu0 %226
      %230 = vset.pattern.permute.xlu0 0
      %231 = vperm.xlu0 %230, %v221
      %v232 = vpop.permute.xlu0 %231
      %235 = vset.pattern.permute.xlu0 0
      %236 = vperm.xlu0 %235, %v222
      %v237 = vpop.permute.xlu0 %236
      %240 = vset.pattern.permute.xlu0 0
      %241 = vperm.xlu0 %240, %v223
      %v242 = vpop.permute.xlu0 %241
      %v248 = vunpack.c.l.b16 %v211
      %v249 = vunpack.c.l.b16 %v212
      %v250 = vunpack.c.l.b16 %v213
      %v251 = vunpack.c.l.b16 %v214
      %v252 = vpack.c.b16 %v249, %v248
      %v253 = vpack.c.b16 %v251, %v250
      %v259 = vunpack.c.l.b16 %v215
      %v260 = vunpack.c.h.b16 %v215
      %v261 = vunpack.c.l.b16 %v216
      %v262 = vunpack.c.h.b16 %v216
      %v263 = vunpack.c.l.b16 %v217
      %v264 = vunpack.c.h.b16 %v217
      %v265 = vunpack.c.l.b16 %v218
      %v266 = vunpack.c.h.b16 %v218
      %v267 = vunpack.c.l.b16 %v219
      %v268 = vunpack.c.h.b16 %v219
      %v269 = vpack.c.b16 %v261, %v259
      %v270 = vpack.c.b16 %v262, %v260
      %v271 = vpack.c.b16 %v265, %v263
      %v272 = vpack.c.b16 %v266, %v264
      %v273 = vpack.c.b16 %v267, %v267
      %v274 = vpack.c.b16 %v268, %v268
      %vm279 = vcmask 293888
      %v281 = vsel %vm279, %v252, 0
      %v284 = vsel %vm279, %v253, 0
      %vm286 = vcmask 1041408
      %v288 = vsel %vm286, %v273, 0
      %v291 = vsel %vm286, %v274, 0
      %293 = vmatprep.subr.bf16.mxu0 %v270
      %294 = vmatpush1.bf16.msra.mxu0 %v269
      %295 = vmatprep.subr.bf16.mxu0 %v272
      %296 = vmatpush1.bf16.msra.mxu0 %v271
      %297 = vmatprep.subr.bf16.mxu0 %v291
      %298 = vmatpush1.bf16.msra.mxu0 %v288
      %299 = vmatprep.subr.bf16.mxu0 0
      %300 = vmatpush1.bf16.msra.mxu0 0
      %301 = vmatprep.subr.bf16.mxu0 0
      %302 = vmatpush1.bf16.msra.mxu0 0
      %303 = vmatprep.subr.bf16.mxu0 0
      %304 = vmatpush1.bf16.msra.mxu0 0
      %305 = vmatprep.subr.bf16.mxu0 0
      %306 = vmatpush1.bf16.msra.mxu0 0
      %307 = vmatprep.subr.bf16.mxu0 0
      %308 = vmatpush1.bf16.msra.mxu0 0
      %309 = vmatprep.subr.bf16.mxu0 0
      %310 = vmatpush1.bf16.msra.mxu0 0
      %311 = vmatprep.subr.bf16.mxu0 0
      %312 = vmatpush1.bf16.msra.mxu0 0
      %313 = vmatprep.subr.bf16.mxu0 0
      %314 = vmatpush1.bf16.msra.mxu0 0
      %315 = vmatprep.subr.bf16.mxu0 0
      %316 = vmatpush1.bf16.msra.mxu0 0
      %317 = vmatprep.subr.bf16.mxu0 0
      %318 = vmatpush1.bf16.msra.mxu0 0
      %319 = vmatprep.subr.bf16.mxu0 0
      %320 = vmatpush1.bf16.msra.mxu0 0
      %321 = vmatprep.subr.bf16.mxu0 0
      %322 = vmatpush1.bf16.msra.mxu0 0
      %323 = vmatprep.subr.bf16.mxu0 0
      %324 = vmatpush1.bf16.msra.mxu0 0
      %325 = vmatprep.mubr.bf16.mxu0 0
      %326 = vmatmul.mubr.bf16.gmra.mrb[0].mxu0 %v281
      %v327 = vpop.f32.mrb[0].mxu0
      %v328 = vadd.f32 %v227, %v327
      %v329 = vpop.f32.mrb[0].mxu0
      %v330 = vadd.f32 %v227, %v329
      %v331 = vpop.f32.mrb[0].mxu0
      %v332 = vadd.f32 %v232, %v331
      %v333 = vpop.f32.mrb[0].mxu0
      %v334 = vadd.f32 %v232, %v333
      %335 = vmatprep.mubr.bf16.mxu0 0
      %336 = vmatmul.mubr.bf16.gmra.mrb[0].mxu0 %v284
      %v337 = vpop.f32.mrb[0].mxu0
      %v338 = vadd.f32 %v237, %v337
      %v339 = vpop.f32.mrb[0].mxu0
      %v340 = vadd.f32 %v237, %v339
      %v341 = vpop.f32.mrb[0].mxu0
      %v342 = vadd.f32 %v242, %v341
      %v343 = vpop.f32.mrb[0].mxu0
      %v344 = vadd.f32 %v242, %v343
      %345 = vdwg.mxu0
      %vm346 = vcmp.ge.f32.partialorder %v328, 0.0
      %vm347 = vcmp.ge.f32.partialorder %v330, 0.0
      %vm348 = vcmp.ge.f32.partialorder %v332, 0.0
      %vm349 = vcmp.ge.f32.partialorder %v334, 0.0
      %vm350 = vcmp.ge.f32.partialorder %v338, 0.0
      %vm351 = vcmp.ge.f32.partialorder %v340, 0.0
      %vm352 = vcmp.ge.f32.partialorder %v342, 0.0
      %vm353 = vcmp.ge.f32.partialorder %v344, 0.0
      %v354 = vmul.f32 %v328, 0.2
      %v355 = vmul.f32 %v330, 0.2
      %v356 = vmul.f32 %v332, 0.2
      %v357 = vmul.f32 %v334, 0.2
      %v358 = vmul.f32 %v338, 0.2
      %v359 = vmul.f32 %v340, 0.2
      %v360 = vmul.f32 %v342, 0.2
      %v361 = vmul.f32 %v344, 0.2
      %v362 = vsel %vm346, %v328, %v354
      %v363 = vsel %vm347, %v330, %v355
      %v364 = vsel %vm348, %v332, %v356
      %v365 = vsel %vm349, %v334, %v357
      %v366 = vsel %vm350, %v338, %v358
      %v367 = vsel %vm351, %v340, %v359
      %v368 = vsel %vm352, %v342, %v360
      %v369 = vsel %vm353, %v344, %v361
      %370 = vst [vmem:[%s208] sm:$0xff] %v362
      %371 = vst [vmem:[%s208 + $0x8] sm:$0xff] %v363
      %372 = vst [vmem:[%s208 + $0x10] sm:$0xff] %v364
      %373 = vst [vmem:[%s208 + $0x18] sm:$0xff] %v365
      %374 = vst [vmem:[%s208 + $0x20] sm:$0xff] %v366
      %375 = vst [vmem:[%s208 + $0x28] sm:$0xff] %v367
      %376 = vst [vmem:[%s208 + $0x30] sm:$0xff] %v368
      %377 = vst [vmem:[%s208 + $0x38] sm:$0xff] %v369
      %s378 = smul.u32 2, %s19
      %p379 = scmp.lt.s32.totalorder %s18, 1
      %s380 = scalar_select %p379, %s18, 1
      %p381 = scmp.lt.s32.totalorder %s378, 1
      %s382 = scalar_select %p381, %s378, 1
      %s383 = smul.addr %s380, 8
      %s384 = sadd.s32 %s382, %s383
      %s385 = smul.addr %s384, 8
      %s386 = scalar_lea.vmem %s3, %s385
      // Predicated region
      $region33: #{resconv_forward.1} parent=31 // pred_check
        %p387 = pneg %p116
      $region34: #{resconv_forward.1} parent=31 // pred_check_branch
        %389 = sbr.rel (%p387) target = $region36
      $region35: #{resconv_forward.1} parent=31 // pred_region
        %s390 = smul.u32 2, %s19
      $region36: #{resconv_forward.1} parent=31 // pred_fallthru
        _
    $region32: #{resconv_forward.1} parent=5 // pred_fallthru
      _
    %p391 = scmp.le.s32.totalorder 2, %s9
    // Predicated region
    $region37: #{resconv_forward.1} parent=5 // pred_check
      %p392 = pneg %p391
    $region38: #{resconv_forward.1} parent=5 // pred_check_branch
      %394 = sbr.rel (%p392) target = $region40
    $region39: #{resconv_forward.1} parent=5 // pred_region
      %s395 = ssub.s32 %s9, 2
      // Predicated region
      $region41: #{resconv_forward.1} parent=39 // pred_check
        %p396 = pneg %p122
      $region42: #{resconv_forward.1} parent=39 // pred_check_branch
        %398 = sbr.rel (%p396) target = $region44
      $region43: #{resconv_forward.1} parent=39 // pred_region
        %s399 = smul.u32 2, %s21
        %p400 = scmp.lt.s32.totalorder %s20, 1
        %s401 = scalar_select %p400, %s20, 1
        %p402 = scmp.lt.s32.totalorder %s399, 1
        %s403 = scalar_select %p402, %s399, 1
        %s404 = smul.addr %s401, 8
        %s405 = sadd.s32 %s403, %s404
        %s406 = smul.addr %s405, 8
        %s407 = scalar_lea.vmem %s3, %s406
      $region44: #{resconv_forward.1} parent=39 // pred_fallthru
        _
    $region40: #{resconv_forward.1} parent=5 // pred_fallthru
      _
  $region6: #{resconv_forward.1} parent=0 // loop_footer
    %s13 = sadd.s32 1, %s9
  $region7: #{resconv_forward.1} parent=0 // loop_footer_branch
    %8 = sbr.rel target = $region3
  $region8: #{resconv_forward.1} parent=0 // loop_exit
    _

</llo_original>
